<compile_context>
chip_gen: v7x
topology: tpu7x:2x2x1
jax: 0.10.0
libtpu: 0.0.40
codegen_flags: <defaults>
</compile_context>

<pallas_src>
import jax
import jax.numpy as jnp
from jax.experimental import pallas as pl
from jax.experimental.pallas import tpu as pltpu

LANES = 128
MAX_TILE_ROWS = 1024   # 1024 x 128 x f32 = 512 KiB per input block
NUM_SPLITS = 2         # leading "parallel" axis -> two TensorCores on v7x


def _round_up(x, m):
    return ((x + m - 1) // m) * m


def _focal_kernel(pred_ref, gt_ref, pos_ref, neg_ref, npos_ref,
                  pos_acc, neg_acc, npos_acc):
    j = pl.program_id(1)

    @pl.when(j == 0)
    def _init():
        pos_acc[...] = jnp.zeros_like(pos_acc)
        neg_acc[...] = jnp.zeros_like(neg_acc)
        npos_acc[...] = jnp.zeros_like(npos_acc)

    pred = pred_ref[...].astype(jnp.float32)
    gt = gt_ref[...].astype(jnp.float32)

    is_pos = gt == 1.0
    pos_inds = is_pos.astype(jnp.float32)
    neg_inds = (gt < 1.0).astype(jnp.float32)

    one_m_pred = 1.0 - pred
    one_m_gt = 1.0 - gt
    neg_w = one_m_gt * one_m_gt
    neg_w = neg_w * neg_w                          # (1 - gt)^4

    # One log per element: the pos/neg branches are mutually exclusive, so
    # select the log argument first and share a single EUP transcendental.
    log_sel = jnp.log(jnp.where(is_pos, pred, one_m_pred))

    pos_loss = log_sel * one_m_pred * one_m_pred * pos_inds
    neg_loss = log_sel * pred * pred * neg_w * neg_inds

    # Sublane-only partial reductions into lane-vector accumulators.
    pos_acc[...] += jnp.sum(pos_loss, axis=0, keepdims=True)
    neg_acc[...] += jnp.sum(neg_loss, axis=0, keepdims=True)
    npos_acc[...] += jnp.sum(pos_inds, axis=0, keepdims=True)

    # Write each split's partial sums once, at the end of its reduction.
    @pl.when(j == pl.num_programs(1) - 1)
    def _finalize():
        pos_ref[0] = pos_acc[...]
        neg_ref[0] = neg_acc[...]
        npos_ref[0] = npos_acc[...]


def focal_loss(pred, gt):
    """CornerNet focal loss forward. pred, gt: (B, C, H, W); pred in (0, 1)."""
    assert pred.shape == gt.shape
    n = pred.size

    # Lane-dense layout: pad flattened inputs up to NUM_SPLITS * tile_rows rows
    # of 128 lanes. Padding uses pred=1, gt=1 so padded elements contribute
    # exactly 0 to both loss terms; the inflated positive count is corrected
    # below.  Rows are a multiple of 16 so bf16 inputs tile cleanly too.
    total_rows = _round_up(max(-(-n // LANES), 16), 16)
    tile_rows = min(MAX_TILE_ROWS, total_rows)
    rows = _round_up(total_rows, NUM_SPLITS * tile_rows)
    n_pad = rows * LANES - n

    pred_flat = pred.reshape(-1)
    gt_flat = gt.reshape(-1)
    if n_pad:
        pred_flat = jnp.pad(pred_flat, (0, n_pad), constant_values=1.0)
        gt_flat = jnp.pad(gt_flat, (0, n_pad), constant_values=1.0)
    pred2d = pred_flat.reshape(rows, LANES)
    gt2d = gt_flat.reshape(rows, LANES)

    steps = rows // (NUM_SPLITS * tile_rows)
    in_map = lambda i, j: (i * steps + j, 0)
    out_map = lambda i, j: (i, 0, 0)

    pos_out, neg_out, npos_out = pl.pallas_call(
        _focal_kernel,
        out_shape=(
            jax.ShapeDtypeStruct((NUM_SPLITS, 1, LANES), jnp.float32),
            jax.ShapeDtypeStruct((NUM_SPLITS, 1, LANES), jnp.float32),
            jax.ShapeDtypeStruct((NUM_SPLITS, 1, LANES), jnp.float32),
        ),
        grid_spec=pltpu.PrefetchScalarGridSpec(
            num_scalar_prefetch=0,
            grid=(NUM_SPLITS, steps),
            in_specs=[
                pl.BlockSpec((tile_rows, LANES), in_map),
                pl.BlockSpec((tile_rows, LANES), in_map),
            ],
            out_specs=[
                pl.BlockSpec((1, 1, LANES), out_map),
                pl.BlockSpec((1, 1, LANES), out_map),
                pl.BlockSpec((1, 1, LANES), out_map),
            ],
            scratch_shapes=[pltpu.VMEM((1, LANES), jnp.float32)] * 3,
        ),
        compiler_params=pltpu.CompilerParams(
            dimension_semantics=("parallel", "arbitrary"),
        ),
    )(pred2d, gt2d)

    pos_sum = jnp.sum(pos_out)
    neg_sum = jnp.sum(neg_out)
    num_pos = jnp.sum(npos_out) - jnp.float32(n_pad)  # padded elems have gt==1

    # num_pos is an integer-valued count, so max(., 1) never changes the taken
    # branch but keeps the untaken branch of the where finite.
    # TODO(synk): forward-only; add a custom VJP if gradients are needed.
    return jnp.where(num_pos == 0.0, -neg_sum,
                     -(pos_sum + neg_sum) / jnp.maximum(num_pos, 1.0))


def _focal_loss_ref(pred, gt):
    pred = pred.astype(jnp.float32)
    gt = gt.astype(jnp.float32)
    pos_inds = (gt == 1.0).astype(jnp.float32)
    neg_inds = (gt < 1.0).astype(jnp.float32)
    neg_weights = jnp.power(1.0 - gt, 4)
    pos_loss = jnp.log(pred) * jnp.power(1.0 - pred, 2) * pos_inds
    neg_loss = jnp.log(1.0 - pred) * jnp.power(pred, 2) * neg_weights * neg_inds
    num_pos = pos_inds.sum()
    pos_loss = pos_loss.sum()
    neg_loss = neg_loss.sum()
    return jnp.where(num_pos == 0.0, -neg_loss,
                     -(pos_loss + neg_loss) / jnp.maximum(num_pos, 1.0))


if __name__ == "__main__":
    key = jax.random.PRNGKey(0)
    k_pred, k_gt, k_pos = jax.random.split(key, 3)

    B, C, H, W = 2, 4, 16, 16
    # Predictions: sigmoid outputs strictly in (0, 1).
    pred = jax.nn.sigmoid(jax.random.normal(k_pred, (B, C, H, W), jnp.float32))
    # Ground-truth heatmap: values in [0, 0.9] with a few exact 1.0 "peaks".
    gt = jax.random.uniform(k_gt, (B, C, H, W), jnp.float32) * 0.9
    peaks = jax.random.uniform(k_pos, (B, C, H, W), jnp.float32) > 0.97
    gt = jnp.where(peaks, 1.0, gt)

    loss = jax.block_until_ready(focal_loss(pred, gt))
    ref = jax.block_until_ready(_focal_loss_ref(pred, gt))
    assert jnp.isfinite(loss), f"non-finite loss: {loss}"
    assert jnp.allclose(loss, ref, rtol=1e-5, atol=1e-5), (loss, ref)

    # Ragged shape (exercises tail padding + num_pos correction) with zero
    # positives (exercises the num_pos == 0 branch).
    pred2 = jax.nn.sigmoid(jax.random.normal(k_pred, (2, 3, 17, 19), jnp.float32))
    gt2 = jax.random.uniform(k_gt, (2, 3, 17, 19), jnp.float32) * 0.9
    loss2 = jax.block_until_ready(focal_loss(pred2, gt2))
    ref2 = jax.block_until_ready(_focal_loss_ref(pred2, gt2))
    assert jnp.isfinite(loss2), f"non-finite loss: {loss2}"
    assert jnp.allclose(loss2, ref2, rtol=1e-5, atol=1e-5), (loss2, ref2)

    print("KERNEL_OK")
</pallas_src>

<mosaic_0001>
module attributes {stable_mosaic.version = 11 : i64} {
  func.func @_focal_kernel(%arg0: i32, %arg1: i32, %arg2: memref<16x128xf32, #tpu.memory_space<vmem>>, %arg3: memref<16x128xf32, #tpu.memory_space<vmem>>, %arg4: memref<1x1x128xf32, #tpu.memory_space<vmem>>, %arg5: memref<1x1x128xf32, #tpu.memory_space<vmem>>, %arg6: memref<1x1x128xf32, #tpu.memory_space<vmem>>, %arg7: memref<1x128xf32, #tpu.memory_space<vmem>>, %arg8: memref<1x128xf32, #tpu.memory_space<vmem>>, %arg9: memref<1x128xf32, #tpu.memory_space<vmem>>) attributes {dimension_semantics = [#tpu.dimension_semantics<parallel>, #tpu.dimension_semantics<arbitrary>], iteration_bounds = array<i64: 2, 1>, scalar_prefetch = 0 : i64, scratch_operands = 3 : i64, tpu.core_type = #tpu.core_type<tc>, window_params = [{transform_indices = @transform_0, window_bounds = array<i64: 16, 128>}, {transform_indices = @transform_1, window_bounds = array<i64: 16, 128>}, {transform_indices = @transform_2, window_bounds = array<i64: 1, 1, 128>}, {transform_indices = @transform_3, window_bounds = array<i64: 1, 1, 128>}, {transform_indices = @transform_4, window_bounds = array<i64: 1, 1, 128>}]} {
    %c0_i32 = arith.constant 0 : i32
    %0 = arith.cmpi eq, %arg1, %c0_i32 : i32
    %1 = arith.extui %0 : i1 to i32
    %c0_i32_0 = arith.constant 0 : i32
    %2 = arith.cmpi ne, %1, %c0_i32_0 : i32
    scf.if %2 {
      %cst_24 = arith.constant 0.000000e+00 : f32
      %46 = vector.broadcast %cst_24 : f32 to vector<1x128xf32>
      %c0_25 = arith.constant 0 : index
      %c0_26 = arith.constant 0 : index
      %47 = vector.load %arg7[%c0_25, %c0_26] : memref<1x128xf32, #tpu.memory_space<vmem>>, vector<1x128xf32>
      tpu.vector_store %arg7[%c0_25, %c0_26], %46 {strides = array<i32>} : memref<1x128xf32, #tpu.memory_space<vmem>>, vector<1x128xf32>,
      %cst_27 = arith.constant 0.000000e+00 : f32
      %48 = vector.broadcast %cst_27 : f32 to vector<1x128xf32>
      %c0_28 = arith.constant 0 : index
      %c0_29 = arith.constant 0 : index
      %49 = vector.load %arg8[%c0_28, %c0_29] : memref<1x128xf32, #tpu.memory_space<vmem>>, vector<1x128xf32>
      tpu.vector_store %arg8[%c0_28, %c0_29], %48 {strides = array<i32>} : memref<1x128xf32, #tpu.memory_space<vmem>>, vector<1x128xf32>,
      %cst_30 = arith.constant 0.000000e+00 : f32
      %50 = vector.broadcast %cst_30 : f32 to vector<1x128xf32>
      %c0_31 = arith.constant 0 : index
      %c0_32 = arith.constant 0 : index
      %51 = vector.load %arg9[%c0_31, %c0_32] : memref<1x128xf32, #tpu.memory_space<vmem>>, vector<1x128xf32>
      tpu.vector_store %arg9[%c0_31, %c0_32], %50 {strides = array<i32>} : memref<1x128xf32, #tpu.memory_space<vmem>>, vector<1x128xf32>,
    } else {
    }
    %c0 = arith.constant 0 : index
    %c0_1 = arith.constant 0 : index
    %3 = vector.load %arg2[%c0, %c0_1] : memref<16x128xf32, #tpu.memory_space<vmem>>, vector<16x128xf32>
    %c0_2 = arith.constant 0 : index
    %c0_3 = arith.constant 0 : index
    %4 = vector.load %arg3[%c0_2, %c0_3] : memref<16x128xf32, #tpu.memory_space<vmem>>, vector<16x128xf32>
    %cst = arith.constant 1.000000e+00 : f32
    %5 = vector.broadcast %cst : f32 to vector<16x128xf32>
    %6 = arith.cmpf oeq, %4, %5 : vector<16x128xf32>
    %7 = arith.extui %6 : vector<16x128xi1> to vector<16x128xi32>
    %8 = arith.sitofp %7 : vector<16x128xi32> to vector<16x128xf32>
    %cst_4 = arith.constant 1.000000e+00 : f32
    %9 = vector.broadcast %cst_4 : f32 to vector<16x128xf32>
    %10 = arith.cmpf olt, %4, %9 : vector<16x128xf32>
    %11 = arith.extui %10 : vector<16x128xi1> to vector<16x128xi32>
    %12 = arith.sitofp %11 : vector<16x128xi32> to vector<16x128xf32>
    %cst_5 = arith.constant 1.000000e+00 : f32
    %13 = vector.broadcast %cst_5 : f32 to vector<16x128xf32>
    %14 = arith.subf %13, %3 : vector<16x128xf32>
    %cst_6 = arith.constant 1.000000e+00 : f32
    %15 = vector.broadcast %cst_6 : f32 to vector<16x128xf32>
    %16 = arith.subf %15, %4 : vector<16x128xf32>
    %17 = arith.mulf %16, %16 : vector<16x128xf32>
    %18 = arith.mulf %17, %17 : vector<16x128xf32>
    %19 = arith.select %6, %3, %14 : vector<16x128xi1>, vector<16x128xf32>
    %20 = math.log %19 : vector<16x128xf32>
    %21 = arith.mulf %20, %14 : vector<16x128xf32>
    %22 = arith.mulf %21, %14 : vector<16x128xf32>
    %23 = arith.mulf %22, %8 : vector<16x128xf32>
    %24 = arith.mulf %20, %3 : vector<16x128xf32>
    %25 = arith.mulf %24, %3 : vector<16x128xf32>
    %26 = arith.mulf %25, %18 : vector<16x128xf32>
    %27 = arith.mulf %26, %12 : vector<16x128xf32>
    %c0_7 = arith.constant 0 : index
    %c0_8 = arith.constant 0 : index
    %28 = vector.load %arg7[%c0_7, %c0_8] : memref<1x128xf32, #tpu.memory_space<vmem>>, vector<1x128xf32>
    %cst_9 = arith.constant dense<0.000000e+00> : vector<128xf32>
    %29 = vector.multi_reduction <add>, %23, %cst_9 [0] : vector<16x128xf32> to vector<128xf32>
    %30 = vector.shape_cast %29 : vector<128xf32> to vector<1x128xf32>
    %31 = arith.addf %28, %30 : vector<1x128xf32>
    %c0_10 = arith.constant 0 : index
    %c0_11 = arith.constant 0 : index
    %32 = vector.load %arg7[%c0_10, %c0_11] : memref<1x128xf32, #tpu.memory_space<vmem>>, vector<1x128xf32>
    tpu.vector_store %arg7[%c0_10, %c0_11], %31 {strides = array<i32>} : memref<1x128xf32, #tpu.memory_space<vmem>>, vector<1x128xf32>,
    %c0_12 = arith.constant 0 : index
    %c0_13 = arith.constant 0 : index
    %33 = vector.load %arg8[%c0_12, %c0_13] : memref<1x128xf32, #tpu.memory_space<vmem>>, vector<1x128xf32>
    %cst_14 = arith.constant dense<0.000000e+00> : vector<128xf32>
    %34 = vector.multi_reduction <add>, %27, %cst_14 [0] : vector<16x128xf32> to vector<128xf32>
    %35 = vector.shape_cast %34 : vector<128xf32> to vector<1x128xf32>
    %36 = arith.addf %33, %35 : vector<1x128xf32>
    %c0_15 = arith.constant 0 : index
    %c0_16 = arith.constant 0 : index
    %37 = vector.load %arg8[%c0_15, %c0_16] : memref<1x128xf32, #tpu.memory_space<vmem>>, vector<1x128xf32>
    tpu.vector_store %arg8[%c0_15, %c0_16], %36 {strides = array<i32>} : memref<1x128xf32, #tpu.memory_space<vmem>>, vector<1x128xf32>,
    %c0_17 = arith.constant 0 : index
    %c0_18 = arith.constant 0 : index
    %38 = vector.load %arg9[%c0_17, %c0_18] : memref<1x128xf32, #tpu.memory_space<vmem>>, vector<1x128xf32>
    %cst_19 = arith.constant dense<0.000000e+00> : vector<128xf32>
    %39 = vector.multi_reduction <add>, %8, %cst_19 [0] : vector<16x128xf32> to vector<128xf32>
    %40 = vector.shape_cast %39 : vector<128xf32> to vector<1x128xf32>
    %41 = arith.addf %38, %40 : vector<1x128xf32>
    %c0_20 = arith.constant 0 : index
    %c0_21 = arith.constant 0 : index
    %42 = vector.load %arg9[%c0_20, %c0_21] : memref<1x128xf32, #tpu.memory_space<vmem>>, vector<1x128xf32>
    tpu.vector_store %arg9[%c0_20, %c0_21], %41 {strides = array<i32>} : memref<1x128xf32, #tpu.memory_space<vmem>>, vector<1x128xf32>,
    %c0_i32_22 = arith.constant 0 : i32
    %43 = arith.cmpi eq, %arg1, %c0_i32_22 : i32
    %44 = arith.extui %43 : i1 to i32
    %c0_i32_23 = arith.constant 0 : i32
    %45 = arith.cmpi ne, %44, %c0_i32_23 : i32
    scf.if %45 {
      %c0_24 = arith.constant 0 : index
      %c0_25 = arith.constant 0 : index
      %46 = vector.load %arg7[%c0_24, %c0_25] : memref<1x128xf32, #tpu.memory_space<vmem>>, vector<1x128xf32>
      %c0_26 = arith.constant 0 : index
      %c0_27 = arith.constant 0 : index
      %c0_28 = arith.constant 0 : index
      %47 = vector.load %arg4[%c0_26, %c0_27, %c0_28] : memref<1x1x128xf32, #tpu.memory_space<vmem>>, vector<1x1x128xf32>
      %48 = vector.shape_cast %47 : vector<1x1x128xf32> to vector<1x128xf32>
      %49 = vector.shape_cast %46 : vector<1x128xf32> to vector<1x1x128xf32>
      tpu.vector_store %arg4[%c0_26, %c0_27, %c0_28], %49 {strides = array<i32>} : memref<1x1x128xf32, #tpu.memory_space<vmem>>, vector<1x1x128xf32>,
      %c0_29 = arith.constant 0 : index
      %c0_30 = arith.constant 0 : index
      %50 = vector.load %arg8[%c0_29, %c0_30] : memref<1x128xf32, #tpu.memory_space<vmem>>, vector<1x128xf32>
      %c0_31 = arith.constant 0 : index
      %c0_32 = arith.constant 0 : index
      %c0_33 = arith.constant 0 : index
      %51 = vector.load %arg5[%c0_31, %c0_32, %c0_33] : memref<1x1x128xf32, #tpu.memory_space<vmem>>, vector<1x1x128xf32>
      %52 = vector.shape_cast %51 : vector<1x1x128xf32> to vector<1x128xf32>
      %53 = vector.shape_cast %50 : vector<1x128xf32> to vector<1x1x128xf32>
      tpu.vector_store %arg5[%c0_31, %c0_32, %c0_33], %53 {strides = array<i32>} : memref<1x1x128xf32, #tpu.memory_space<vmem>>, vector<1x1x128xf32>,
      %c0_34 = arith.constant 0 : index
      %c0_35 = arith.constant 0 : index
      %54 = vector.load %arg9[%c0_34, %c0_35] : memref<1x128xf32, #tpu.memory_space<vmem>>, vector<1x128xf32>
      %c0_36 = arith.constant 0 : index
      %c0_37 = arith.constant 0 : index
      %c0_38 = arith.constant 0 : index
      %55 = vector.load %arg6[%c0_36, %c0_37, %c0_38] : memref<1x1x128xf32, #tpu.memory_space<vmem>>, vector<1x1x128xf32>
      %56 = vector.shape_cast %55 : vector<1x1x128xf32> to vector<1x128xf32>
      %57 = vector.shape_cast %54 : vector<1x128xf32> to vector<1x1x128xf32>
      tpu.vector_store %arg6[%c0_36, %c0_37, %c0_38], %57 {strides = array<i32>} : memref<1x1x128xf32, #tpu.memory_space<vmem>>, vector<1x1x128xf32>,
    } else {
    }
    return
  }
  func.func @transform_0(%arg0: i32, %arg1: i32) -> (i32, i32) {
    %c1_i32 = arith.constant 1 : i32
    %0 = arith.muli %arg0, %c1_i32 : i32
    %1 = arith.addi %0, %arg1 : i32
    %c0_i32 = arith.constant 0 : i32
    %c0_i32_0 = arith.constant 0 : i32
    return %1, %c0_i32 : i32, i32
  }
  func.func @transform_1(%arg0: i32, %arg1: i32) -> (i32, i32) {
    %c1_i32 = arith.constant 1 : i32
    %0 = arith.muli %arg0, %c1_i32 : i32
    %1 = arith.addi %0, %arg1 : i32
    %c0_i32 = arith.constant 0 : i32
    %c0_i32_0 = arith.constant 0 : i32
    return %1, %c0_i32 : i32, i32
  }
  func.func @transform_2(%arg0: i32, %arg1: i32) -> (i32, i32, i32) {
    %c0_i32 = arith.constant 0 : i32
    %c0_i32_0 = arith.constant 0 : i32
    %c0_i32_1 = arith.constant 0 : i32
    return %arg0, %c0_i32, %c0_i32_0 : i32, i32, i32
  }
  func.func @transform_3(%arg0: i32, %arg1: i32) -> (i32, i32, i32) {
    %c0_i32 = arith.constant 0 : i32
    %c0_i32_0 = arith.constant 0 : i32
    %c0_i32_1 = arith.constant 0 : i32
    return %arg0, %c0_i32, %c0_i32_0 : i32, i32, i32
  }
  func.func @transform_4(%arg0: i32, %arg1: i32) -> (i32, i32, i32) {
    %c0_i32 = arith.constant 0 : i32
    %c0_i32_0 = arith.constant 0 : i32
    %c0_i32_1 = arith.constant 0 : i32
    return %arg0, %c0_i32, %c0_i32_0 : i32, i32, i32
  }
}

</mosaic_0001>

<llo_original>
// kernel: tpu_custom_call.1
$region0: #{tpu_custom_call.1}
  #allocation0 [shape = 'u32[]', space=smem, size = 0x4, offset = 0x4, fixed_abs, tag = 'smem constant byte address 0x4 - core index']
  #allocation1 [shape = 'u32[144,128]{1,0:T(1,128)}', space=vmem, size = 0x12000, scoped, tag = 'internal scratch']
  #allocation2 [shape = 'f32[1,128]{1,0:T(1,128)}', space=vmem, size = 0x200, scoped, tag = 'scratch operand']
  #allocation3 [shape = 'f32[1,128]{1,0:T(1,128)}', space=vmem, size = 0x200, scoped, tag = 'scratch operand']
  #allocation4 [shape = 'f32[1,128]{1,0:T(1,128)}', space=vmem, size = 0x200, scoped, tag = 'scratch operand']
  %s0 = inlined_call_operand.hbm [shape: f32[32,128], index: 0, kind: input, shape index: {}]
  %s1 = inlined_call_operand.hbm [shape: f32[32,128], index: 1, kind: input, shape index: {}]
  %s2 = inlined_call_operand.hbm [shape: f32[2,1,128], index: 2, kind: output, shape index: {0}]
  %s3 = inlined_call_operand.hbm [shape: f32[2,1,128], index: 3, kind: output, shape index: {1}]
  %s4 = inlined_call_operand.hbm [shape: f32[2,1,128], index: 4, kind: output, shape index: {2}]
  %5 = xla_tuple %s2, %s3, %s4
  %s6 = sld [smem:[#allocation0]]
  $region73: #{tpu_custom_call.1} parent=0
    _
  %s8 = ssub.s32 1, %s6
  %s9 = scalar_select 0, %s8, %s6
  $region1: #{tpu_custom_call.1} parent=0
    #allocation5 [shape = 'u8[16384]{0}', space=vmem, size = 0x4000, scoped, tag = 'input window, operand 0']
    #allocation6 [shape = 's32[2]{0}', space=sflag, size = 0x8, scoped, tag = 'scoped memory for tpu_custom_call.1']
    #allocation7 [shape = 's32[2]{0}', space=sflag, size = 0x8, scoped, tag = 'scoped memory for tpu_custom_call.1']
    #allocation8 [shape = 'u8[16384]{0}', space=vmem, size = 0x4000, scoped, tag = 'input window, operand 1']
    #allocation9 [shape = 's32[2]{0}', space=sflag, size = 0x8, scoped, tag = 'scoped memory for tpu_custom_call.1']
    #allocation10 [shape = 'u8[1024]{0}', space=vmem, size = 0x400, scoped, tag = 'output window, operand 0']
    #allocation11 [shape = 'u8[1024]{0}', space=vmem, size = 0x400, scoped, tag = 'output window, operand 1']
    #allocation12 [shape = 's32[2]{0}', space=sflag, size = 0x8, scoped, tag = 'scoped memory for tpu_custom_call.1']
    #allocation13 [shape = 'u8[1024]{0}', space=vmem, size = 0x400, scoped, tag = 'output window, operand 2']
    %10 = vsyncpa [#allocation6], 0
    %s11 = scalar_lea.sflag [#allocation6], 1
    %12 = vsyncpa %s11, 0
    %13 = vsyncpa [#allocation9], 0
    %s14 = scalar_lea.sflag [#allocation9], 1
    %15 = vsyncpa %s14, 0
    %16 = vsyncpa [#allocation7], 0
    %s17 = scalar_lea.sflag [#allocation7], 1
    %18 = vsyncpa %s17, 0
    %19 = vsyncpa [#allocation12], 0
    %s20 = scalar_lea.sflag [#allocation12], 1
    %21 = vsyncpa %s20, 0
    loop: start=0, step=1, limit=4
    $region2: #{tpu_custom_call.1} parent=1 // loop_pre_header
      _
    $region3: #{tpu_custom_call.1} parent=1 // loop_header
      %s23 = sphi 0, %s27
      %p24 = scmp.ge.s32.totalorder %s23, 4
      %s30 = sphi 0, %s42
      %s31 = sphi 0, %s38
      %s32 = sphi 0, %s30
      %s33 = sphi 0, %s31
      %s34 = sphi 0, %s32
      %s35 = sphi 0, %s33
      %s47 = sphi 0, %s49
      %s50 = sphi 0, %s47
      %s51 = sphi 0, %s50
      %s67 = sphi 0, %s51
      %s75 = sphi 0, %s77
      %s78 = sphi 0, %s75
      %s79 = sphi 0, %s78
      %s95 = sphi 0, %s79
      %s101 = sphi 0, %s103
      %s104 = sphi 0, %s101
      %s105 = sphi 0, %s104
      %s121 = sphi 0, %s105
      %s127 = sphi 0, %s129
      %s130 = sphi 0, %s127
      %s131 = sphi 0, %s130
      %s147 = sphi 0, %s131
      %s153 = sphi 0, %s155
      %s156 = sphi 0, %s153
      %s157 = sphi 0, %s156
      %s173 = sphi 0, %s157
    $region4: #{tpu_custom_call.1} parent=1 // loop_header_branch
      %26 = sbr.rel (%p24) target = $region8
    $region5: #{tpu_custom_call.1} parent=1 // loop_body
      %s28 = ssub.s32 %s23, 1
      %s29 = ssub.s32 %s23, 2
      %s36 = sadd.s32 1, %s31
      %p37 = scmp.ge.s32.totalorder %s36, 1
      %s38 = scalar_select %p37, 0, %s36
      %s39 = sadd.s32 1, %s30
      %s40 = scalar_select %p37, %s39, %s30
      %p41 = scmp.ge.s32.totalorder %s40, 2
      %s42 = scalar_select %p41, 0, %s40
      %s43 = sadd.s32 %s30, %s31
      %s44 = sadd.s32 %s42, %s38
      %s45 = ssub.s32 %s43, %s44
      %p46 = scmp.eq.s32.totalorder %s45, 0
      %s48 = sadd.s32 %s47, 1
      %s49 = scalar_select %p46, %s47, %s48
      %p52 = pneg %p46
      %p53 = scmp.eq.s32.totalorder %s23, 1
      %p54 = por %p52, %p53
      %p55 = scmp.ne.s32.totalorder %s47, %s50
      %p56 = scmp.eq.s32.totalorder %s23, 0
      %p57 = por %p55, %p56
      %p58 = scmp.ne.s32.totalorder %s47, %s50
      %p59 = scmp.eq.s32.totalorder %s28, 1
      %p60 = por %p58, %p59
      %p61 = scmp.ne.s32.totalorder %s50, %s51
      %p62 = scmp.eq.s32.totalorder %s28, 0
      %p63 = por %p61, %p62
      %p64 = scmp.ne.s32.totalorder %s50, %s51
      %p65 = scmp.eq.s32.totalorder %s29, 1
      %p66 = por %p64, %p65
      %p68 = scmp.ne.s32.totalorder %s51, %s67
      %p69 = scmp.eq.s32.totalorder %s29, 0
      %p70 = por %p68, %p69
      %s71 = sadd.s32 %s30, %s31
      %s72 = sadd.s32 %s42, %s38
      %s73 = ssub.s32 %s71, %s72
      %p74 = scmp.eq.s32.totalorder %s73, 0
      %s76 = sadd.s32 %s75, 1
      %s77 = scalar_select %p74, %s75, %s76
      %p80 = pneg %p74
      %p81 = scmp.eq.s32.totalorder %s23, 1
      %p82 = por %p80, %p81
      %p83 = scmp.ne.s32.totalorder %s75, %s78
      %p84 = scmp.eq.s32.totalorder %s23, 0
      %p85 = por %p83, %p84
      %p86 = scmp.ne.s32.totalorder %s75, %s78
      %p87 = scmp.eq.s32.totalorder %s28, 1
      %p88 = por %p86, %p87
      %p89 = scmp.ne.s32.totalorder %s78, %s79
      %p90 = scmp.eq.s32.totalorder %s28, 0
      %p91 = por %p89, %p90
      %p92 = scmp.ne.s32.totalorder %s78, %s79
      %p93 = scmp.eq.s32.totalorder %s29, 1
      %p94 = por %p92, %p93
      %p96 = scmp.ne.s32.totalorder %s79, %s95
      %p97 = scmp.eq.s32.totalorder %s29, 0
      %p98 = por %p96, %p97
      %s99 = ssub.s32 %s30, %s42
      %p100 = scmp.eq.s32.totalorder %s99, 0
      %s102 = sadd.s32 %s101, 1
      %s103 = scalar_select %p100, %s101, %s102
      %p106 = pneg %p100
      %p107 = scmp.eq.s32.totalorder %s23, 1
      %p108 = por %p106, %p107
      %p109 = scmp.ne.s32.totalorder %s101, %s104
      %p110 = scmp.eq.s32.totalorder %s23, 0
      %p111 = por %p109, %p110
      %p112 = scmp.ne.s32.totalorder %s101, %s104
      %p113 = scmp.eq.s32.totalorder %s28, 1
      %p114 = por %p112, %p113
      %p115 = scmp.ne.s32.totalorder %s104, %s105
      %p116 = scmp.eq.s32.totalorder %s28, 0
      %p117 = por %p115, %p116
      %p118 = scmp.ne.s32.totalorder %s104, %s105
      %p119 = scmp.eq.s32.totalorder %s29, 1
      %p120 = por %p118, %p119
      %p122 = scmp.ne.s32.totalorder %s105, %s121
      %p123 = scmp.eq.s32.totalorder %s29, 0
      %p124 = por %p122, %p123
      %s125 = ssub.s32 %s30, %s42
      %p126 = scmp.eq.s32.totalorder %s125, 0
      %s128 = sadd.s32 %s127, 1
      %s129 = scalar_select %p126, %s127, %s128
      %p132 = pneg %p126
      %p133 = scmp.eq.s32.totalorder %s23, 1
      %p134 = por %p132, %p133
      %p135 = scmp.ne.s32.totalorder %s127, %s130
      %p136 = scmp.eq.s32.totalorder %s23, 0
      %p137 = por %p135, %p136
      %p138 = scmp.ne.s32.totalorder %s127, %s130
      %p139 = scmp.eq.s32.totalorder %s28, 1
      %p140 = por %p138, %p139
      %p141 = scmp.ne.s32.totalorder %s130, %s131
      %p142 = scmp.eq.s32.totalorder %s28, 0
      %p143 = por %p141, %p142
      %p144 = scmp.ne.s32.totalorder %s130, %s131
      %p145 = scmp.eq.s32.totalorder %s29, 1
      %p146 = por %p144, %p145
      %p148 = scmp.ne.s32.totalorder %s131, %s147
      %p149 = scmp.eq.s32.totalorder %s29, 0
      %p150 = por %p148, %p149
      %s151 = ssub.s32 %s30, %s42
      %p152 = scmp.eq.s32.totalorder %s151, 0
      %s154 = sadd.s32 %s153, 1
      %s155 = scalar_select %p152, %s153, %s154
      %p158 = pneg %p152
      %p159 = scmp.eq.s32.totalorder %s23, 1
      %p160 = por %p158, %p159
      %p161 = scmp.ne.s32.totalorder %s153, %s156
      %p162 = scmp.eq.s32.totalorder %s23, 0
      %p163 = por %p161, %p162
      %p164 = scmp.ne.s32.totalorder %s153, %s156
      %p165 = scmp.eq.s32.totalorder %s28, 1
      %p166 = por %p164, %p165
      %p167 = scmp.ne.s32.totalorder %s156, %s157
      %p168 = scmp.eq.s32.totalorder %s28, 0
      %p169 = por %p167, %p168
      %p170 = scmp.ne.s32.totalorder %s156, %s157
      %p171 = scmp.eq.s32.totalorder %s29, 1
      %p172 = por %p170, %p171
      %p174 = scmp.ne.s32.totalorder %s157, %s173
      %p175 = scmp.eq.s32.totalorder %s29, 0
      %p176 = por %p174, %p175
      %p177 = scmp.le.s32.totalorder 1, %s23
      %p178 = scmp.lt.s32.totalorder %s23, 3
      %p179 = pnand %p177, %p178
      %p180 = pneg %p179
      // Predicated region
      $region9: #{tpu_custom_call.1} parent=5 // pred_check
        _
      $region10: #{tpu_custom_call.1} parent=5 // pred_check_branch
        %182 = sbr.rel (%p179) target = $region12
      $region11: #{tpu_custom_call.1} parent=5 // pred_region
        %s183 = ssub.s32 %s23, 1
      $region12: #{tpu_custom_call.1} parent=5 // pred_fallthru
        _
      %p184 = scmp.lt.s32.totalorder %s23, 2
      // Predicated region
      $region13: #{tpu_custom_call.1} parent=5 // pred_check
        %p185 = pneg %p184
      $region14: #{tpu_custom_call.1} parent=5 // pred_check_branch
        %187 = sbr.rel (%p185) target = $region16
      $region15: #{tpu_custom_call.1} parent=5 // pred_region
        // Predicated region
        $region17: #{tpu_custom_call.1} parent=15 // pred_check
          %p188 = pneg %p57
        $region18: #{tpu_custom_call.1} parent=15 // pred_check_branch
          %190 = sbr.rel (%p188) target = $region20
        $region19: #{tpu_custom_call.1} parent=15 // pred_region
          %s191 = sand.u32 %s47, 1
          %s192 = scalar_lea.sflag [#allocation6], %s191
          %s193 = sand.u32 %s47, 1
          %s194 = smul.addr %s193, 16
          %s195 = scalar_lea.vmem [#allocation5], %s194
          %s196 = sadd.s32 %s30, %s31
          %s197 = smul.u32 2, %s196
          %s199 = ssub.s32 256, 256
          %200 = vsyncadd %s192, %s199
          %s201 = smul.addr %s197, 128
          %s202 = scalar_lea.hbm %s0, %s201
          %s203 = sshll.u32 %s195, 4
          %s204 = int_to_ptr.vmem [resolvable:$true] %s203
          %209 = dma.hbm_to_vmem [thread:$0]  %s202, 256, %s204, %s192, 128, 128, 8
        $region20: #{tpu_custom_call.1} parent=15 // pred_fallthru
          _
        // Predicated region
        $region21: #{tpu_custom_call.1} parent=15 // pred_check
          %p210 = pneg %p85
        $region22: #{tpu_custom_call.1} parent=15 // pred_check_branch
          %212 = sbr.rel (%p210) target = $region24
        $region23: #{tpu_custom_call.1} parent=15 // pred_region
          %s213 = sand.u32 %s75, 1
          %s214 = scalar_lea.sflag [#allocation9], %s213
          %s215 = sand.u32 %s75, 1
          %s216 = smul.addr %s215, 16
          %s217 = scalar_lea.vmem [#allocation8], %s216
          %s218 = sadd.s32 %s30, %s31
          %s219 = smul.u32 2, %s218
          %s221 = ssub.s32 256, 256
          %222 = vsyncadd %s214, %s221
          %s223 = smul.addr %s219, 128
          %s224 = scalar_lea.hbm %s1, %s223
          %s225 = sshll.u32 %s217, 4
          %s226 = int_to_ptr.vmem [resolvable:$true] %s225
          %231 = dma.hbm_to_vmem [thread:$0]  %s224, 256, %s226, %s214, 128, 128, 8
        $region24: #{tpu_custom_call.1} parent=15 // pred_fallthru
          _
      $region16: #{tpu_custom_call.1} parent=5 // pred_fallthru
        _
      %p232 = scmp.le.s32.totalorder 1, %s23
      %p233 = scmp.lt.s32.totalorder %s23, 3
      %p234 = pnand %p232, %p233
      %p235 = pneg %p234
      // Predicated region
      $region25: #{tpu_custom_call.1} parent=5 // pred_check
        _
      $region26: #{tpu_custom_call.1} parent=5 // pred_check_branch
        %237 = sbr.rel (%p234) target = $region28
      $region27: #{tpu_custom_call.1} parent=5 // pred_region
        %s238 = ssub.s32 %s23, 1
        %s239 = sand.u32 %s50, 1
        %s240 = scalar_lea.sflag [#allocation6], %s239
        %s241 = sand.u32 %s50, 1
        %s242 = smul.addr %s241, 16
        %s243 = scalar_lea.vmem [#allocation5], %s242
        // Predicated region
        $region29: #{tpu_custom_call.1} parent=27 // pred_check
          %p244 = pneg %p63
        $region30: #{tpu_custom_call.1} parent=27 // pred_check_branch
          %246 = sbr.rel (%p244) target = $region32
        $region31: #{tpu_custom_call.1} parent=27 // pred_region
          %247 = dma.done %s240, 256
        $region32: #{tpu_custom_call.1} parent=27 // pred_fallthru
          _
        %s248 = sand.u32 %s78, 1
        %s249 = scalar_lea.sflag [#allocation9], %s248
        %s250 = sand.u32 %s78, 1
        %s251 = smul.addr %s250, 16
        %s252 = scalar_lea.vmem [#allocation8], %s251
        // Predicated region
        $region33: #{tpu_custom_call.1} parent=27 // pred_check
          %p253 = pneg %p91
        $region34: #{tpu_custom_call.1} parent=27 // pred_check_branch
          %255 = sbr.rel (%p253) target = $region36
        $region35: #{tpu_custom_call.1} parent=27 // pred_region
          %256 = dma.done %s249, 256
        $region36: #{tpu_custom_call.1} parent=27 // pred_fallthru
          _
        %s257 = sand.u32 %s50, 1
        %s258 = scalar_lea.sflag [#allocation6], %s257
        %s259 = sand.u32 %s50, 1
        %s260 = smul.addr %s259, 16
        %s261 = scalar_lea.vmem [#allocation5], %s260
        %p262 = pneg %p63
        %p263 = pneg %p60
        %s264 = sand.u32 %s78, 1
        %s265 = scalar_lea.sflag [#allocation9], %s264
        %s266 = sand.u32 %s78, 1
        %s267 = smul.addr %s266, 16
        %s268 = scalar_lea.vmem [#allocation8], %s267
        %p269 = pneg %p91
        %p270 = pneg %p88
        %p271 = pneg %p117
        %p272 = pneg %p114
        %s273 = sand.u32 %s104, 1
        %s274 = scalar_lea.sflag [#allocation7], %s273
        %s275 = sand.u32 %s104, 1
        %s276 = scalar_lea.vmem [#allocation10], %s275
        %p277 = pneg %p143
        %p278 = pneg %p140
        %s279 = sand.u32 %s28, 1
        %s280 = scalar_lea.sflag [#allocation12], %s279
        %s281 = sand.u32 %s130, 1
        %s282 = scalar_lea.vmem [#allocation11], %s281
        %p283 = pneg %p169
        %p284 = pneg %p166
        %s285 = sand.u32 %s28, 1
        %s286 = scalar_lea.sflag [#allocation12], %s285
        %s287 = sand.u32 %s156, 1
        %s288 = scalar_lea.vmem [#allocation13], %s287
        %s289 = sadd.s32 %s32, %s33
        %s290 = smul.u32 2, %s289
        %s291 = sadd.s32 %s32, %s33
        %s292 = smul.u32 2, %s291
        %p293 = scmp.eq.s32.totalorder %s33, 0
        // Predicated region
        $region37: #{tpu_custom_call.1} parent=27 // pred_check
          %p294 = pneg %p293
        $region38: #{tpu_custom_call.1} parent=27 // pred_check_branch
          %296 = sbr.rel (%p294) target = $region40
        $region39: #{tpu_custom_call.1} parent=27 // pred_region
          %297 = vst [vmem:[#allocation2] sm:$0x1] 0.0
          %298 = vst [vmem:[#allocation3] sm:$0x1] 0.0
          %299 = vst [vmem:[#allocation4] sm:$0x1] 0.0
        $region40: #{tpu_custom_call.1} parent=27 // pred_fallthru
          _
        %v300 = vld [vmem:[%s243] sm:$0xff]
        %v301 = vld [vmem:[%s243 + $0x8] sm:$0xff]
        %v302 = vld [vmem:[%s252] sm:$0xff]
        %v303 = vld [vmem:[%s252 + $0x8] sm:$0xff]
        %vm304 = vcmp.eq.f32.partialorder %v302, 1.0
        %vm305 = vcmp.eq.f32.partialorder %v303, 1.0
        %v306 = vsel %vm304, 1, 0
        %v307 = vsel %vm305, 1, 0
        %v308 = vcvt.s32.f32 %v306
        %v309 = vcvt.s32.f32 %v307
        %vm310 = vcmp.lt.f32.partialorder %v302, 1.0
        %vm311 = vcmp.lt.f32.partialorder %v303, 1.0
        %v312 = vsel %vm310, 1, 0
        %v313 = vsel %vm311, 1, 0
        %v314 = vcvt.s32.f32 %v312
        %v315 = vcvt.s32.f32 %v313
        %v316 = vsub.f32 1.0, %v300
        %v317 = vsub.f32 1.0, %v301
        %v318 = vsub.f32 1.0, %v302
        %v319 = vsub.f32 1.0, %v303
        %v320 = vmul.f32 %v318, %v318
        %v321 = vmul.f32 %v319, %v319
        %v322 = vmul.f32 %v320, %v320
        %v323 = vmul.f32 %v321, %v321
        %v324 = vsel %vm304, %v300, %v316
        %v325 = vsel %vm305, %v301, %v317
        %v326 = vlog2.pop %v324
        %v327 = vmul.f32 %v326, 0.6931472
        %v328 = vlog2.pop %v325
        %v329 = vmul.f32 %v328, 0.6931472
        %v330 = vmul.f32 %v327, %v316
        %v331 = vmul.f32 %v329, %v317
        %v332 = vmul.f32 %v330, %v316
        %v333 = vmul.f32 %v331, %v317
        %v334 = vmul.f32 %v332, %v308
        %v335 = vmul.f32 %v333, %v309
        %v336 = vmul.f32 %v327, %v300
        %v337 = vmul.f32 %v329, %v301
        %v338 = vmul.f32 %v336, %v300
        %v339 = vmul.f32 %v337, %v301
        %v340 = vmul.f32 %v338, %v322
        %v341 = vmul.f32 %v339, %v323
        %v342 = vmul.f32 %v340, %v314
        %v343 = vmul.f32 %v341, %v315
        %v344 = vld [vmem:[#allocation2] sm:$0x1]
        %v345 = vadd.f32 %v334, %v335
        %v346 = vrot.slane %v345, 4
        %v347 = vadd.f32 %v345, %v346
        %v348 = vrot.slane %v347, 2
        %v349 = vadd.f32 %v347, %v348
        %v350 = vrot.slane %v349, 1
        %v351 = vadd.f32 %v349, %v350
        %v352 = vadd.f32 %v344, %v351
        %353 = vst [vmem:[#allocation2] sm:$0x1] %v352
        %v354 = vld [vmem:[#allocation3] sm:$0x1]
        %v355 = vadd.f32 %v342, %v343
        %v356 = vrot.slane %v355, 4
        %v357 = vadd.f32 %v355, %v356
        %v358 = vrot.slane %v357, 2
        %v359 = vadd.f32 %v357, %v358
        %v360 = vrot.slane %v359, 1
        %v361 = vadd.f32 %v359, %v360
        %v362 = vadd.f32 %v354, %v361
        %363 = vst [vmem:[#allocation3] sm:$0x1] %v362
        %v364 = vld [vmem:[#allocation4] sm:$0x1]
        %v365 = vadd.f32 %v308, %v309
        %v366 = vrot.slane %v365, 4
        %v367 = vadd.f32 %v365, %v366
        %v368 = vrot.slane %v367, 2
        %v369 = vadd.f32 %v367, %v368
        %v370 = vrot.slane %v369, 1
        %v371 = vadd.f32 %v369, %v370
        %v372 = vadd.f32 %v364, %v371
        %373 = vst [vmem:[#allocation4] sm:$0x1] %v372
        // Predicated region
        $region41: #{tpu_custom_call.1} parent=27 // pred_check
          %p374 = pneg %p293
        $region42: #{tpu_custom_call.1} parent=27 // pred_check_branch
          %376 = sbr.rel (%p374) target = $region44
        $region43: #{tpu_custom_call.1} parent=27 // pred_region
          %v377 = vld [vmem:[#allocation2] sm:$0x1]
          %378 = vst [vmem:[%s276] sm:$0x1] %v377
          %v379 = vld [vmem:[#allocation3] sm:$0x1]
          %380 = vst [vmem:[%s282] sm:$0x1] %v379
          %v381 = vld [vmem:[#allocation4] sm:$0x1]
          %382 = vst [vmem:[%s288] sm:$0x1] %v381
        $region44: #{tpu_custom_call.1} parent=27 // pred_fallthru
          _
        %s383 = sand.u32 %s104, 1
        %s384 = scalar_lea.sflag [#allocation7], %s383
        %s385 = sand.u32 %s104, 1
        %s386 = scalar_lea.vmem [#allocation10], %s385
        %s387 = sand.u32 %s28, 1
        %s388 = scalar_lea.sflag [#allocation12], %s387
        %s389 = sand.u32 %s130, 1
        %s390 = scalar_lea.vmem [#allocation11], %s389
        %s391 = sand.u32 %s28, 1
        %s392 = scalar_lea.sflag [#allocation12], %s391
        %s393 = sand.u32 %s156, 1
        %s394 = scalar_lea.vmem [#allocation13], %s393
        // Predicated region
        $region45: #{tpu_custom_call.1} parent=27 // pred_check
          %p395 = pneg %p114
        $region46: #{tpu_custom_call.1} parent=27 // pred_check_branch
          %397 = sbr.rel (%p395) target = $region48
        $region47: #{tpu_custom_call.1} parent=27 // pred_region
          %s399 = ssub.s32 16, 16
          %400 = vsyncadd %s384, %s399
          %s401 = smul.addr %s32, 16
          %s402 = scalar_lea.hbm %s2, %s401
          %s404 = sshll.u32 %s386, 4
          %s405 = int_to_ptr.vmem [resolvable:$true] %s404
          %407 = dma.vmem_to_hbm [thread:$0]  %s405, 16, %s402, %s384
        $region48: #{tpu_custom_call.1} parent=27 // pred_fallthru
          _
        // Predicated region
        $region49: #{tpu_custom_call.1} parent=27 // pred_check
          %p408 = pneg %p140
        $region50: #{tpu_custom_call.1} parent=27 // pred_check_branch
          %410 = sbr.rel (%p408) target = $region52
        $region51: #{tpu_custom_call.1} parent=27 // pred_region
          %s412 = ssub.s32 16, 16
          %413 = vsyncadd %s388, %s412
          %s414 = smul.addr %s32, 16
          %s415 = scalar_lea.hbm %s3, %s414
          %s417 = sshll.u32 %s390, 4
          %s418 = int_to_ptr.vmem [resolvable:$true] %s417
          %420 = dma.vmem_to_hbm [thread:$0]  %s418, 16, %s415, %s388
        $region52: #{tpu_custom_call.1} parent=27 // pred_fallthru
          _
        // Predicated region
        $region53: #{tpu_custom_call.1} parent=27 // pred_check
          %p421 = pneg %p166
        $region54: #{tpu_custom_call.1} parent=27 // pred_check_branch
          %423 = sbr.rel (%p421) target = $region56
        $region55: #{tpu_custom_call.1} parent=27 // pred_region
          %s425 = ssub.s32 16, 16
          %426 = vsyncadd %s392, %s425
          %s427 = smul.addr %s32, 16
          %s428 = scalar_lea.hbm %s4, %s427
          %s430 = sshll.u32 %s394, 4
          %s431 = int_to_ptr.vmem [resolvable:$true] %s430
          %433 = dma.vmem_to_hbm [thread:$0]  %s431, 16, %s428, %s392
        $region56: #{tpu_custom_call.1} parent=27 // pred_fallthru
          _
      $region28: #{tpu_custom_call.1} parent=5 // pred_fallthru
        _
      %p434 = scmp.le.s32.totalorder 2, %s23
      // Predicated region
      $region57: #{tpu_custom_call.1} parent=5 // pred_check
        %p435 = pneg %p434
      $region58: #{tpu_custom_call.1} parent=5 // pred_check_branch
        %437 = sbr.rel (%p435) target = $region60
      $region59: #{tpu_custom_call.1} parent=5 // pred_region
        %s438 = ssub.s32 %s23, 2
        // Predicated region
        $region61: #{tpu_custom_call.1} parent=59 // pred_check
          %p439 = pneg %p120
        $region62: #{tpu_custom_call.1} parent=59 // pred_check_branch
          %441 = sbr.rel (%p439) target = $region64
        $region63: #{tpu_custom_call.1} parent=59 // pred_region
          %s442 = sand.u32 %s105, 1
          %s443 = scalar_lea.sflag [#allocation7], %s442
          %s444 = sand.u32 %s105, 1
          %s445 = scalar_lea.vmem [#allocation10], %s444
          %446 = dma.done %s443, 16
        $region64: #{tpu_custom_call.1} parent=59 // pred_fallthru
          _
        // Predicated region
        $region65: #{tpu_custom_call.1} parent=59 // pred_check
          %p447 = pneg %p146
        $region66: #{tpu_custom_call.1} parent=59 // pred_check_branch
          %449 = sbr.rel (%p447) target = $region68
        $region67: #{tpu_custom_call.1} parent=59 // pred_region
          %s450 = sand.u32 %s29, 1
          %s451 = scalar_lea.sflag [#allocation12], %s450
          %s452 = sand.u32 %s131, 1
          %s453 = scalar_lea.vmem [#allocation11], %s452
          %454 = dma.done %s451, 16
        $region68: #{tpu_custom_call.1} parent=59 // pred_fallthru
          _
        // Predicated region
        $region69: #{tpu_custom_call.1} parent=59 // pred_check
          %p455 = pneg %p172
        $region70: #{tpu_custom_call.1} parent=59 // pred_check_branch
          %457 = sbr.rel (%p455) target = $region72
        $region71: #{tpu_custom_call.1} parent=59 // pred_region
          %s458 = sand.u32 %s29, 1
          %s459 = scalar_lea.sflag [#allocation12], %s458
          %s460 = sand.u32 %s157, 1
          %s461 = scalar_lea.vmem [#allocation13], %s460
          %462 = dma.done %s459, 16
        $region72: #{tpu_custom_call.1} parent=59 // pred_fallthru
          _
      $region60: #{tpu_custom_call.1} parent=5 // pred_fallthru
        _
    $region6: #{tpu_custom_call.1} parent=1 // loop_footer
      %s27 = sadd.s32 1, %s23
    $region7: #{tpu_custom_call.1} parent=1 // loop_footer_branch
      %22 = sbr.rel target = $region3
    $region8: #{tpu_custom_call.1} parent=1 // loop_exit
      _
    %463 = vsyncpa [#allocation6], 1
    %s464 = scalar_lea.sflag [#allocation6], 1
    %465 = vsyncpa %s464, 1
    %466 = vsyncpa [#allocation9], 1
    %s467 = scalar_lea.sflag [#allocation9], 1
    %468 = vsyncpa %s467, 1
    %469 = vsyncpa [#allocation7], 1
    %s470 = scalar_lea.sflag [#allocation7], 1
    %471 = vsyncpa %s470, 1
    %472 = vsyncpa [#allocation12], 1
    %s473 = scalar_lea.sflag [#allocation12], 1
    %474 = vsyncpa %s473, 1

</llo_original>
